<compile_context>
chip_gen: v7x
topology: tpu7x:2x2x1
jax: 0.10.0
libtpu: 0.0.40
codegen_flags: <defaults>
</compile_context>

<pallas_src>
import functools

import jax
import jax.numpy as jnp
from jax.experimental import pallas as pl
from jax.experimental.pallas import tpu as pltpu


def _round_down_to(x, m):
    return (x // m) * m


def _vmem_budget_bytes():
    """Conservative per-kernel VMEM budget (v7x has only 64 MiB physical)."""
    try:
        cap = int(pltpu.get_tpu_info().vmem_capacity_bytes)
    except Exception:
        cap = 64 << 20
    return max(16 << 20, (cap * 3) // 4)


def _pick_vocab_tile(v, d, b, vmem_budget):
    """Largest multiple-of-128 divisor of V giving a ~512 KiB-class bf16 weight
    tile that fits the VMEM budget alongside the resident (B, V) output."""
    resident = b * v * 4 + 2 * b * d * 2 + 4 * b * 4          # out + embeds + m/l
    weight_budget = max(vmem_budget - resident, 1 << 20)
    cap = _round_down_to(weight_budget // (2 * 2 * d), 128)   # 2 bufs, bf16
    target = max(512, _round_down_to((512 << 10) // (2 * d), 128))
    target = max(128, min(target, cap))
    if v <= target or v % 128 != 0:
        return v        # single full-width block (block == array dim is legal)
    best = 128
    tv = 128
    while tv <= target:
        if v % tv == 0:
            best = tv
        tv += 128
    return best


def _skipgram_kernel(emb_ref, wt_ref, out_ref, m_ref, l_ref, *, tv, nv):
    """One vocab tile per grid step.

    emb_ref : (B, D)  bf16, VMEM-resident (constant index_map)
    wt_ref  : (D, TV) bf16, streamed vocab tile of the transposed weight
    out_ref : (B, V)  f32,  VMEM-resident output (constant index_map)
    m_ref / l_ref : (B, 1) f32 running max / running sum(exp) for the online LSE
    """
    j = pl.program_id(0)

    @pl.when(j == 0)
    def _init():
        m_ref[...] = jnp.full(m_ref.shape, -jnp.inf, m_ref.dtype)
        l_ref[...] = jnp.zeros(l_ref.shape, l_ref.dtype)

    # (B, D) bf16 @ (D, TV) bf16 -> (B, TV) f32 on the MXU (lane-dense RHS).
    logits = jnp.dot(emb_ref[...], wt_ref[...],
                     preferred_element_type=jnp.float32)

    if nv == 1:
        out_ref[...] = logits
    else:
        col = pl.multiple_of(j * tv, 128)
        out_ref[:, pl.ds(col, tv)] = logits

    # Online (flash-style) log-sum-exp across vocab tiles.
    m_prev = m_ref[...]
    m_new = jnp.maximum(m_prev, jnp.max(logits, axis=-1, keepdims=True))
    l_ref[...] = (l_ref[...] * jnp.exp(m_prev - m_new)
                  + jnp.sum(jnp.exp(logits - m_new), axis=-1, keepdims=True))
    m_ref[...] = m_new

    @pl.when(j == nv - 1)
    def _finalize():
        lse = m_ref[...] + jnp.log(l_ref[...])
        out_ref[...] = out_ref[...] - lse   # in place, before single writeback


def prepare_linear_weight(lin_weight):
    """(V, D) f32 -> lane-dense (D, V) bf16, done ONCE at init
    (weights-stationary) instead of on every forward call."""
    return jnp.asarray(lin_weight).T.astype(jnp.bfloat16)


@jax.jit
def skipgram_forward(indices, emb_table, w_t):
    """indices: (B,) int; emb_table: (V, D) f32; w_t: (D, V) bf16 (prepared).
    Returns log_softmax(emb_table[indices] @ W.T, axis=1) as (B, V) f32."""
    B = indices.shape[0]
    D, V = w_t.shape

    # Embedding gather: B*D is tiny, so a wrapper-side XLA gather is far
    # cheaper than DMA'ing the whole (V, D) table into VMEM.
    embeds = jnp.take(emb_table, indices.astype(jnp.int32), axis=0)
    embeds = embeds.astype(jnp.bfloat16)

    budget = _vmem_budget_bytes()
    TV = _pick_vocab_tile(V, D, B, budget)
    NV = V // TV

    # TODO(synk): if B*V*4 ever outgrows the VMEM budget, fall back to a
    # streamed (B, TV) logits output plus a separate wide-tile LSE-subtract pass.
    need = (B * V * 4            # resident (B, V) f32 output
            + 2 * B * D * 2      # (B, D) bf16 embeds, double-buffered
            + 2 * D * TV * 2     # (D, TV) bf16 weight tiles, double-buffered
            + 2 * B * 4)         # m / l scratch
    vmem_limit = int(min(budget, max(2 * need, 8 << 20)))

    cost = pl.CostEstimate(
        flops=2 * B * D * V,
        transcendentals=B * V,
        bytes_accessed=D * V * 2 + B * D * 2 + B * V * 4,
    )

    kernel = functools.partial(_skipgram_kernel, tv=TV, nv=NV)

    # TODO(synk): on v7x, split the vocab axis across the two TensorCores
    # (core-parallel leading axis + partial-LSE combine) to use both HBM ports.
    out = pl.pallas_call(
        kernel,
        out_shape=jax.ShapeDtypeStruct((B, V), jnp.float32),
        grid_spec=pltpu.PrefetchScalarGridSpec(
            num_scalar_prefetch=0,
            grid=(NV,),
            in_specs=[
                pl.BlockSpec((B, D), lambda j: (0, 0)),    # embeds (resident)
                pl.BlockSpec((D, TV), lambda j: (0, j)),   # weight tile stream
            ],
            out_specs=pl.BlockSpec((B, V), lambda j: (0, 0)),  # resident output
            scratch_shapes=[
                pltpu.VMEM((B, 1), jnp.float32),   # running max
                pltpu.VMEM((B, 1), jnp.float32),   # running sum(exp)
            ],
        ),
        compiler_params=pltpu.CompilerParams(
            dimension_semantics=("arbitrary",),    # LSE + resident output
            vmem_limit_bytes=vmem_limit,
        ),
        cost_estimate=cost,
    )(embeds, w_t)
    return out


if __name__ == "__main__":
    vocab_size = 4096       # with D=128 -> TV=2048, 2 vocab tiles (tiled LSE path)
    embedding_dim = 128
    batch = 8

    key = jax.random.PRNGKey(0)
    k_emb, k_lin, k_idx = jax.random.split(key, 3)

    # Deterministic synthetic parameters (shapes per nn.Embedding / nn.Linear).
    emb_table = jax.random.normal(k_emb, (vocab_size, embedding_dim), jnp.float32)
    lin_weight = (
        jax.random.uniform(k_lin, (vocab_size, embedding_dim), jnp.float32) - 0.5
    ) * (2.0 / jnp.sqrt(embedding_dim))
    indices = jax.random.randint(k_idx, (batch,), 0, vocab_size, dtype=jnp.int32)

    w_t = prepare_linear_weight(lin_weight)   # once, at "init" time
    out = jax.block_until_ready(skipgram_forward(indices, emb_table, w_t))

    # Reference in plain JAX with the same bf16-input / f32-accumulate numerics.
    emb_bf = jnp.take(emb_table, indices, axis=0).astype(jnp.bfloat16).astype(jnp.float32)
    w_bf = lin_weight.astype(jnp.bfloat16).astype(jnp.float32)
    ref = jax.nn.log_softmax(emb_bf @ w_bf.T, axis=1)

    assert out.shape == (batch, vocab_size)
    max_err = float(jnp.max(jnp.abs(out - ref)))
    assert jnp.allclose(out, ref, atol=2e-3, rtol=2e-3), max_err

    print("KERNEL_OK")
</pallas_src>

<mosaic_0001>
module attributes {stable_mosaic.version = 11 : i64} {
  func.func @_skipgram_kernel(%arg0: i32, %arg1: memref<8x128xbf16, #tpu.memory_space<vmem>>, %arg2: memref<128x2048xbf16, #tpu.memory_space<vmem>>, %arg3: memref<8x4096xf32, #tpu.memory_space<vmem>>, %arg4: memref<8x1xf32, #tpu.memory_space<vmem>>, %arg5: memref<8x1xf32, #tpu.memory_space<vmem>>) attributes {dimension_semantics = [#tpu.dimension_semantics<arbitrary>], iteration_bounds = array<i64: 2>, scalar_prefetch = 0 : i64, scratch_operands = 2 : i64, tpu.core_type = #tpu.core_type<tc>, window_params = [{pipeline_mode = #tpu.pipeline_mode<synchronous>, transform_indices = @transform_0, window_bounds = array<i64: 8, 128>}, {transform_indices = @transform_1, window_bounds = array<i64: 128, 2048>}, {pipeline_mode = #tpu.pipeline_mode<synchronous>, transform_indices = @transform_2, window_bounds = array<i64: 8, 4096>}]} {
    %c0_i32 = arith.constant 0 : i32
    %0 = arith.cmpi eq, %arg0, %c0_i32 : i32
    %1 = arith.extui %0 : i1 to i32
    %c0_i32_0 = arith.constant 0 : i32
    %2 = arith.cmpi ne, %1, %c0_i32_0 : i32
    scf.if %2 {
      %cst_16 = arith.constant 0xFF800000 : f32
      %29 = vector.broadcast %cst_16 : f32 to vector<8x1xf32>
      %c0_17 = arith.constant 0 : index
      %c0_18 = arith.constant 0 : index
      %30 = vector.load %arg4[%c0_17, %c0_18] : memref<8x1xf32, #tpu.memory_space<vmem>>, vector<8x1xf32>
      tpu.vector_store %arg4[%c0_17, %c0_18], %29 {strides = array<i32>} : memref<8x1xf32, #tpu.memory_space<vmem>>, vector<8x1xf32>,
      %cst_19 = arith.constant 0.000000e+00 : f32
      %31 = vector.broadcast %cst_19 : f32 to vector<8x1xf32>
      %c0_20 = arith.constant 0 : index
      %c0_21 = arith.constant 0 : index
      %32 = vector.load %arg5[%c0_20, %c0_21] : memref<8x1xf32, #tpu.memory_space<vmem>>, vector<8x1xf32>
      tpu.vector_store %arg5[%c0_20, %c0_21], %31 {strides = array<i32>} : memref<8x1xf32, #tpu.memory_space<vmem>>, vector<8x1xf32>,
    } else {
    }
    %c0 = arith.constant 0 : index
    %c0_1 = arith.constant 0 : index
    %3 = vector.load %arg1[%c0, %c0_1] : memref<8x128xbf16, #tpu.memory_space<vmem>>, vector<8x128xbf16>
    %c0_2 = arith.constant 0 : index
    %c0_3 = arith.constant 0 : index
    %4 = vector.load %arg2[%c0_2, %c0_3] : memref<128x2048xbf16, #tpu.memory_space<vmem>>, vector<128x2048xbf16>
    %cst = arith.constant dense<0.000000e+00> : vector<8x2048xf32>
    %5 = tpu.matmul %3, %4, %cst {dimension_numbers = #tpu.dot_dimension_numbers<[1], [0], [0], [1], [0, 0, 1, 1], [], []>} : vector<8x128xbf16>, vector<128x2048xbf16>, vector<8x2048xf32> -> vector<8x2048xf32>
    %c2048_i32 = arith.constant 2048 : i32
    %6 = arith.muli %arg0, %c2048_i32 : i32
    %7 = tpu.assume_multiple %6, 128 : i32
    %c0_4 = arith.constant 0 : index
    %8 = arith.index_cast %7 : i32 to index
    %9 = vector.load %arg3[%c0_4, %8] : memref<8x4096xf32, #tpu.memory_space<vmem>>, vector<8x2048xf32>
    tpu.vector_store %arg3[%c0_4, %8], %5 {strides = array<i32>} : memref<8x4096xf32, #tpu.memory_space<vmem>>, vector<8x2048xf32>,
    %c0_5 = arith.constant 0 : index
    %c0_6 = arith.constant 0 : index
    %10 = vector.load %arg4[%c0_5, %c0_6] : memref<8x1xf32, #tpu.memory_space<vmem>>, vector<8x1xf32>
    %cst_7 = arith.constant dense<0xFF800000> : vector<8xf32>
    %11 = vector.multi_reduction <maximumf>, %5, %cst_7 [1] : vector<8x2048xf32> to vector<8xf32>
    %12 = vector.shape_cast %11 : vector<8xf32> to vector<8x1xf32>
    %13 = arith.maximumf %10, %12 : vector<8x1xf32>
    %c0_8 = arith.constant 0 : index
    %c0_9 = arith.constant 0 : index
    %14 = vector.load %arg5[%c0_8, %c0_9] : memref<8x1xf32, #tpu.memory_space<vmem>>, vector<8x1xf32>
    %15 = arith.subf %10, %13 : vector<8x1xf32>
    %16 = math.exp %15 : vector<8x1xf32>
    %17 = arith.mulf %14, %16 : vector<8x1xf32>
    %18 = vector.broadcast %13 : vector<8x1xf32> to vector<8x2048xf32>
    %19 = arith.subf %5, %18 : vector<8x2048xf32>
    %20 = math.exp %19 : vector<8x2048xf32>
    %cst_10 = arith.constant dense<0.000000e+00> : vector<8xf32>
    %21 = vector.multi_reduction <add>, %20, %cst_10 [1] : vector<8x2048xf32> to vector<8xf32>
    %22 = vector.shape_cast %21 : vector<8xf32> to vector<8x1xf32>
    %23 = arith.addf %17, %22 : vector<8x1xf32>
    %c0_11 = arith.constant 0 : index
    %c0_12 = arith.constant 0 : index
    %24 = vector.load %arg5[%c0_11, %c0_12] : memref<8x1xf32, #tpu.memory_space<vmem>>, vector<8x1xf32>
    tpu.vector_store %arg5[%c0_11, %c0_12], %23 {strides = array<i32>} : memref<8x1xf32, #tpu.memory_space<vmem>>, vector<8x1xf32>,
    %c0_13 = arith.constant 0 : index
    %c0_14 = arith.constant 0 : index
    %25 = vector.load %arg4[%c0_13, %c0_14] : memref<8x1xf32, #tpu.memory_space<vmem>>, vector<8x1xf32>
    tpu.vector_store %arg4[%c0_13, %c0_14], %13 {strides = array<i32>} : memref<8x1xf32, #tpu.memory_space<vmem>>, vector<8x1xf32>,
    %c1_i32 = arith.constant 1 : i32
    %26 = arith.cmpi eq, %arg0, %c1_i32 : i32
    %27 = arith.extui %26 : i1 to i32
    %c0_i32_15 = arith.constant 0 : i32
    %28 = arith.cmpi ne, %27, %c0_i32_15 : i32
    scf.if %28 {
      %c0_16 = arith.constant 0 : index
      %c0_17 = arith.constant 0 : index
      %29 = vector.load %arg4[%c0_16, %c0_17] : memref<8x1xf32, #tpu.memory_space<vmem>>, vector<8x1xf32>
      %c0_18 = arith.constant 0 : index
      %c0_19 = arith.constant 0 : index
      %30 = vector.load %arg5[%c0_18, %c0_19] : memref<8x1xf32, #tpu.memory_space<vmem>>, vector<8x1xf32>
      %31 = math.log %30 : vector<8x1xf32>
      %32 = arith.addf %29, %31 : vector<8x1xf32>
      %c0_20 = arith.constant 0 : index
      %c0_21 = arith.constant 0 : index
      %33 = vector.load %arg3[%c0_20, %c0_21] : memref<8x4096xf32, #tpu.memory_space<vmem>>, vector<8x4096xf32>
      %34 = vector.broadcast %32 : vector<8x1xf32> to vector<8x4096xf32>
      %35 = arith.subf %33, %34 : vector<8x4096xf32>
      %c0_22 = arith.constant 0 : index
      %c0_23 = arith.constant 0 : index
      %36 = vector.load %arg3[%c0_22, %c0_23] : memref<8x4096xf32, #tpu.memory_space<vmem>>, vector<8x4096xf32>
      tpu.vector_store %arg3[%c0_22, %c0_23], %35 {strides = array<i32>} : memref<8x4096xf32, #tpu.memory_space<vmem>>, vector<8x4096xf32>,
    } else {
    }
    return
  }
  func.func @transform_0(%arg0: i32) -> (i32, i32) {
    %c0_i32 = arith.constant 0 : i32
    %c0_i32_0 = arith.constant 0 : i32
    %c0_i32_1 = arith.constant 0 : i32
    return %c0_i32, %c0_i32_0 : i32, i32
  }
  func.func @transform_1(%arg0: i32) -> (i32, i32) {
    %c0_i32 = arith.constant 0 : i32
    %c0_i32_0 = arith.constant 0 : i32
    return %c0_i32, %arg0 : i32, i32
  }
  func.func @transform_2(%arg0: i32) -> (i32, i32) {
    %c0_i32 = arith.constant 0 : i32
    %c0_i32_0 = arith.constant 0 : i32
    %c0_i32_1 = arith.constant 0 : i32
    return %c0_i32, %c0_i32_0 : i32, i32
  }
}

</mosaic_0001>

<llo_original>
// kernel: skipgram_forward.1
$region0: #{skipgram_forward.1}
  #allocation0 [shape = 'u32[]', space=smem, size = 0x4, offset = 0x4, fixed_abs, tag = 'smem constant byte address 0x4 - core index']
  #allocation1 [shape = 'u32[144,128]{1,0:T(1,128)}', space=vmem, size = 0x12000, scoped, tag = 'internal scratch']
  #allocation2 [shape = 'f32[8,1]{1,0:T(8,128)}', space=vmem, size = 0x1000, scoped, tag = 'scratch operand']
  #allocation3 [shape = 'f32[8,1]{1,0:T(8,128)}', space=vmem, size = 0x1000, scoped, tag = 'scratch operand']
  %s0 = inlined_call_operand.vmem [shape: bf16[8,128], index: 0, kind: input, shape index: {}]
  %s1 = inlined_call_operand.hbm [shape: bf16[128,4096], index: 1, kind: input, shape index: {}]
  %s2 = inlined_call_operand.hbm [shape: f32[8,4096], index: 2, kind: output, shape index: {}]
  %s3 = sld [smem:[#allocation0]]
  $region53: #{skipgram_forward.1} parent=0
    _
  %s5 = ssub.s32 1, %s3
  %s6 = scalar_select 0, %s5, %s3
  $region1: #{skipgram_forward.1} parent=0
    #allocation4 [shape = 'u8[1048576]{0}', space=vmem, size = 0x100000, scoped, tag = 'input window, operand 1']
    #allocation5 [shape = 's32[2]{0}', space=sflag, size = 0x8, scoped, tag = 'scoped memory for skipgram_forward.1']
    #allocation6 [shape = 's32[2]{0}', space=sflag, size = 0x8, scoped, tag = 'scoped memory for skipgram_forward.1']
    #allocation7 [shape = 'u8[131072]{0}', space=vmem, size = 0x20000, scoped, tag = 'output window, operand 0, single buffered']
    %7 = vsyncpa [#allocation5], 0
    %s8 = scalar_lea.sflag [#allocation5], 1
    %9 = vsyncpa %s8, 0
    %10 = vsyncpa [#allocation6], 0
    loop: start=0, step=1, limit=4
    $region2: #{skipgram_forward.1} parent=1 // loop_pre_header
      _
    $region3: #{skipgram_forward.1} parent=1 // loop_header
      %s12 = sphi 0, %s16
      %p13 = scmp.ge.s32.totalorder %s12, 4
      %s20 = sphi 0, %s20
      %s22 = sphi 0, %s20
      %s23 = sphi 0, %s22
      %s37 = sphi 0, %s23
      %s43 = sphi 0, %s45
      %s46 = sphi 0, %s43
      %s47 = sphi 0, %s46
      %s63 = sphi 0, %s47
      %s67 = sphi 0, %s67
      %s69 = sphi 0, %s67
      %s70 = sphi 0, %s69
      %s84 = sphi 0, %s70
    $region4: #{skipgram_forward.1} parent=1 // loop_header_branch
      %15 = sbr.rel (%p13) target = $region8
    $region5: #{skipgram_forward.1} parent=1 // loop_body
      %s17 = ssub.s32 %s12, 1
      %s18 = ssub.s32 %s12, 2
      %s19 = sadd.s32 %s12, 1
      %s21 = sadd.s32 %s20, 1
      %p24 = scmp.eq.s32.totalorder %s12, 1
      %p25 = scmp.ne.s32.totalorder %s20, %s22
      %p26 = scmp.eq.s32.totalorder %s12, 0
      %p27 = por %p25, %p26
      %p28 = scmp.ne.s32.totalorder %s20, %s22
      %p29 = scmp.eq.s32.totalorder %s17, 1
      %p30 = por %p28, %p29
      %p31 = scmp.ne.s32.totalorder %s22, %s23
      %p32 = scmp.eq.s32.totalorder %s17, 0
      %p33 = por %p31, %p32
      %p34 = scmp.ne.s32.totalorder %s22, %s23
      %p35 = scmp.eq.s32.totalorder %s18, 1
      %p36 = por %p34, %p35
      %p38 = scmp.ne.s32.totalorder %s23, %s37
      %p39 = scmp.eq.s32.totalorder %s18, 0
      %p40 = por %p38, %p39
      %s41 = ssub.s32 %s12, %s19
      %p42 = scmp.eq.s32.totalorder %s41, 0
      %s44 = sadd.s32 %s43, 1
      %s45 = scalar_select %p42, %s43, %s44
      %p48 = pneg %p42
      %p49 = scmp.eq.s32.totalorder %s12, 1
      %p50 = por %p48, %p49
      %p51 = scmp.ne.s32.totalorder %s43, %s46
      %p52 = scmp.eq.s32.totalorder %s12, 0
      %p53 = por %p51, %p52
      %p54 = scmp.ne.s32.totalorder %s43, %s46
      %p55 = scmp.eq.s32.totalorder %s17, 1
      %p56 = por %p54, %p55
      %p57 = scmp.ne.s32.totalorder %s46, %s47
      %p58 = scmp.eq.s32.totalorder %s17, 0
      %p59 = por %p57, %p58
      %p60 = scmp.ne.s32.totalorder %s46, %s47
      %p61 = scmp.eq.s32.totalorder %s18, 1
      %p62 = por %p60, %p61
      %p64 = scmp.ne.s32.totalorder %s47, %s63
      %p65 = scmp.eq.s32.totalorder %s18, 0
      %p66 = por %p64, %p65
      %s68 = sadd.s32 %s67, 1
      %p71 = scmp.eq.s32.totalorder %s12, 1
      %p72 = scmp.ne.s32.totalorder %s67, %s69
      %p73 = scmp.eq.s32.totalorder %s12, 0
      %p74 = por %p72, %p73
      %p75 = scmp.ne.s32.totalorder %s67, %s69
      %p76 = scmp.eq.s32.totalorder %s17, 1
      %p77 = por %p75, %p76
      %p78 = scmp.ne.s32.totalorder %s69, %s70
      %p79 = scmp.eq.s32.totalorder %s17, 0
      %p80 = por %p78, %p79
      %p81 = scmp.ne.s32.totalorder %s69, %s70
      %p82 = scmp.eq.s32.totalorder %s18, 1
      %p83 = por %p81, %p82
      %p85 = scmp.ne.s32.totalorder %s70, %s84
      %p86 = scmp.eq.s32.totalorder %s18, 0
      %p87 = por %p85, %p86
      %p88 = scmp.le.s32.totalorder 1, %s12
      %p89 = scmp.lt.s32.totalorder %s12, 3
      %p90 = pnand %p88, %p89
      %p91 = pneg %p90
      // Predicated region
      $region9: #{skipgram_forward.1} parent=5 // pred_check
        _
      $region10: #{skipgram_forward.1} parent=5 // pred_check_branch
        %93 = sbr.rel (%p90) target = $region12
      $region11: #{skipgram_forward.1} parent=5 // pred_region
        %s94 = ssub.s32 %s12, 1
        // Predicated region
        $region13: #{skipgram_forward.1} parent=11 // pred_check
          %p95 = pneg %p33
        $region14: #{skipgram_forward.1} parent=11 // pred_check_branch
          %97 = sbr.rel (%p95) target = $region16
        $region15: #{skipgram_forward.1} parent=11 // pred_region
          _
        $region16: #{skipgram_forward.1} parent=11 // pred_fallthru
          _
      $region12: #{skipgram_forward.1} parent=5 // pred_fallthru
        _
      %p98 = scmp.lt.s32.totalorder %s12, 2
      // Predicated region
      $region17: #{skipgram_forward.1} parent=5 // pred_check
        %p99 = pneg %p98
      $region18: #{skipgram_forward.1} parent=5 // pred_check_branch
        %101 = sbr.rel (%p99) target = $region20
      $region19: #{skipgram_forward.1} parent=5 // pred_region
        // Predicated region
        $region21: #{skipgram_forward.1} parent=19 // pred_check
          %p102 = pneg %p53
        $region22: #{skipgram_forward.1} parent=19 // pred_check_branch
          %104 = sbr.rel (%p102) target = $region24
        $region23: #{skipgram_forward.1} parent=19 // pred_region
          %s105 = sand.u32 %s43, 1
          %s106 = scalar_lea.sflag [#allocation5], %s105
          %s107 = sand.u32 %s43, 1
          %s108 = smul.addr %s107, 1024
          %s109 = scalar_lea.vmem [#allocation4], %s108
          %s110 = smul.u32 16, %s12
          %s112 = ssub.s32 16384, 16384
          %113 = vsyncadd %s106, %s112
          %s114 = smul.addr %s110, 64
          %s115 = scalar_lea.hbm %s1, %s114
          %s116 = sshll.u32 %s109, 4
          %s117 = int_to_ptr.vmem [resolvable:$true] %s116
          %122 = dma.hbm_to_vmem [thread:$0]  %s115, 16384, %s117, %s106, 2048, 1024, 64
        $region24: #{skipgram_forward.1} parent=19 // pred_fallthru
          _
      $region20: #{skipgram_forward.1} parent=5 // pred_fallthru
        _
      %p123 = scmp.le.s32.totalorder 1, %s12
      %p124 = scmp.lt.s32.totalorder %s12, 3
      %p125 = pnand %p123, %p124
      %p126 = pneg %p125
      // Predicated region
      $region25: #{skipgram_forward.1} parent=5 // pred_check
        _
      $region26: #{skipgram_forward.1} parent=5 // pred_check_branch
        %128 = sbr.rel (%p125) target = $region28
      $region27: #{skipgram_forward.1} parent=5 // pred_region
        %s129 = ssub.s32 %s12, 1
        %s130 = sand.u32 %s46, 1
        %s131 = scalar_lea.sflag [#allocation5], %s130
        %s132 = sand.u32 %s46, 1
        %s133 = smul.addr %s132, 1024
        %s134 = scalar_lea.vmem [#allocation4], %s133
        // Predicated region
        $region29: #{skipgram_forward.1} parent=27 // pred_check
          %p135 = pneg %p59
        $region30: #{skipgram_forward.1} parent=27 // pred_check_branch
          %137 = sbr.rel (%p135) target = $region32
        $region31: #{skipgram_forward.1} parent=27 // pred_region
          %138 = dma.done %s131, 16384
        $region32: #{skipgram_forward.1} parent=27 // pred_fallthru
          _
        %p139 = pneg %p33
        %p140 = pneg %p30
        %s141 = sand.u32 %s46, 1
        %s142 = scalar_lea.sflag [#allocation5], %s141
        %s143 = sand.u32 %s46, 1
        %s144 = smul.addr %s143, 1024
        %s145 = scalar_lea.vmem [#allocation4], %s144
        %p146 = pneg %p59
        %p147 = pneg %p56
        %p148 = pneg %p80
        %p149 = pneg %p77
        %s150 = smul.u32 16, %s17
        %p152 = scmp.eq.s32.totalorder %s17, 0
        // Predicated region
        $region33: #{skipgram_forward.1} parent=27 // pred_check
          %p153 = pneg %p152
        $region34: #{skipgram_forward.1} parent=27 // pred_check_branch
          %155 = sbr.rel (%p153) target = $region36
        $region35: #{skipgram_forward.1} parent=27 // pred_region
          %vm156 = vcmask 7168
          %157 = vst.msk [vmem:[#allocation2] sm:$0xff] %vm156, -inf
          %158 = vst.msk [vmem:[#allocation3] sm:$0xff] %vm156, 0.0
        $region36: #{skipgram_forward.1} parent=27 // pred_fallthru
          _
        %v159 = vld [vmem:[%s0] sm:$0xf]
        %v160 = vld [vmem:[%s134] sm:$0xff]
        %v161 = vld [vmem:[%s134 + $0x8] sm:$0xff]
        %v162 = vld [vmem:[%s134 + $0x10] sm:$0xff]
        %v163 = vld [vmem:[%s134 + $0x18] sm:$0xff]
        %v164 = vld [vmem:[%s134 + $0x20] sm:$0xff]
        %v165 = vld [vmem:[%s134 + $0x28] sm:$0xff]
        %v166 = vld [vmem:[%s134 + $0x30] sm:$0xff]
        %v167 = vld [vmem:[%s134 + $0x38] sm:$0xff]
        %v168 = vld [vmem:[%s134 + $0x40] sm:$0xff]
        %v169 = vld [vmem:[%s134 + $0x48] sm:$0xff]
        %v170 = vld [vmem:[%s134 + $0x50] sm:$0xff]
        %v171 = vld [vmem:[%s134 + $0x58] sm:$0xff]
        %v172 = vld [vmem:[%s134 + $0x60] sm:$0xff]
        %v173 = vld [vmem:[%s134 + $0x68] sm:$0xff]
        %v174 = vld [vmem:[%s134 + $0x70] sm:$0xff]
        %v175 = vld [vmem:[%s134 + $0x78] sm:$0xff]
        %v176 = vld [vmem:[%s134 + $0x80] sm:$0xff]
        %v177 = vld [vmem:[%s134 + $0x88] sm:$0xff]
        %v178 = vld [vmem:[%s134 + $0x90] sm:$0xff]
        %v179 = vld [vmem:[%s134 + $0x98] sm:$0xff]
        %v180 = vld [vmem:[%s134 + $0xa0] sm:$0xff]
        %v181 = vld [vmem:[%s134 + $0xa8] sm:$0xff]
        %v182 = vld [vmem:[%s134 + $0xb0] sm:$0xff]
        %v183 = vld [vmem:[%s134 + $0xb8] sm:$0xff]
        %v184 = vld [vmem:[%s134 + $0xc0] sm:$0xff]
        %v185 = vld [vmem:[%s134 + $0xc8] sm:$0xff]
        %v186 = vld [vmem:[%s134 + $0xd0] sm:$0xff]
        %v187 = vld [vmem:[%s134 + $0xd8] sm:$0xff]
        %v188 = vld [vmem:[%s134 + $0xe0] sm:$0xff]
        %v189 = vld [vmem:[%s134 + $0xe8] sm:$0xff]
        %v190 = vld [vmem:[%s134 + $0xf0] sm:$0xff]
        %v191 = vld [vmem:[%s134 + $0xf8] sm:$0xff]
        %v192 = vld [vmem:[%s134 + $0x100] sm:$0xff]
        %v193 = vld [vmem:[%s134 + $0x108] sm:$0xff]
        %v194 = vld [vmem:[%s134 + $0x110] sm:$0xff]
        %v195 = vld [vmem:[%s134 + $0x118] sm:$0xff]
        %v196 = vld [vmem:[%s134 + $0x120] sm:$0xff]
        %v197 = vld [vmem:[%s134 + $0x128] sm:$0xff]
        %v198 = vld [vmem:[%s134 + $0x130] sm:$0xff]
        %v199 = vld [vmem:[%s134 + $0x138] sm:$0xff]
        %v200 = vld [vmem:[%s134 + $0x140] sm:$0xff]
        %v201 = vld [vmem:[%s134 + $0x148] sm:$0xff]
        %v202 = vld [vmem:[%s134 + $0x150] sm:$0xff]
        %v203 = vld [vmem:[%s134 + $0x158] sm:$0xff]
        %v204 = vld [vmem:[%s134 + $0x160] sm:$0xff]
        %v205 = vld [vmem:[%s134 + $0x168] sm:$0xff]
        %v206 = vld [vmem:[%s134 + $0x170] sm:$0xff]
        %v207 = vld [vmem:[%s134 + $0x178] sm:$0xff]
        %v208 = vld [vmem:[%s134 + $0x180] sm:$0xff]
        %v209 = vld [vmem:[%s134 + $0x188] sm:$0xff]
        %v210 = vld [vmem:[%s134 + $0x190] sm:$0xff]
        %v211 = vld [vmem:[%s134 + $0x198] sm:$0xff]
        %v212 = vld [vmem:[%s134 + $0x1a0] sm:$0xff]
        %v213 = vld [vmem:[%s134 + $0x1a8] sm:$0xff]
        %v214 = vld [vmem:[%s134 + $0x1b0] sm:$0xff]
        %v215 = vld [vmem:[%s134 + $0x1b8] sm:$0xff]
        %v216 = vld [vmem:[%s134 + $0x1c0] sm:$0xff]
        %v217 = vld [vmem:[%s134 + $0x1c8] sm:$0xff]
        %v218 = vld [vmem:[%s134 + $0x1d0] sm:$0xff]
        %v219 = vld [vmem:[%s134 + $0x1d8] sm:$0xff]
        %v220 = vld [vmem:[%s134 + $0x1e0] sm:$0xff]
        %v221 = vld [vmem:[%s134 + $0x1e8] sm:$0xff]
        %v222 = vld [vmem:[%s134 + $0x1f0] sm:$0xff]
        %v223 = vld [vmem:[%s134 + $0x1f8] sm:$0xff]
        %v224 = vld [vmem:[%s134 + $0x200] sm:$0xff]
        %v225 = vld [vmem:[%s134 + $0x208] sm:$0xff]
        %v226 = vld [vmem:[%s134 + $0x210] sm:$0xff]
        %v227 = vld [vmem:[%s134 + $0x218] sm:$0xff]
        %v228 = vld [vmem:[%s134 + $0x220] sm:$0xff]
        %v229 = vld [vmem:[%s134 + $0x228] sm:$0xff]
        %v230 = vld [vmem:[%s134 + $0x230] sm:$0xff]
        %v231 = vld [vmem:[%s134 + $0x238] sm:$0xff]
        %v232 = vld [vmem:[%s134 + $0x240] sm:$0xff]
        %v233 = vld [vmem:[%s134 + $0x248] sm:$0xff]
        %v234 = vld [vmem:[%s134 + $0x250] sm:$0xff]
        %v235 = vld [vmem:[%s134 + $0x258] sm:$0xff]
        %v236 = vld [vmem:[%s134 + $0x260] sm:$0xff]
        %v237 = vld [vmem:[%s134 + $0x268] sm:$0xff]
        %v238 = vld [vmem:[%s134 + $0x270] sm:$0xff]
        %v239 = vld [vmem:[%s134 + $0x278] sm:$0xff]
        %v240 = vld [vmem:[%s134 + $0x280] sm:$0xff]
        %v241 = vld [vmem:[%s134 + $0x288] sm:$0xff]
        %v242 = vld [vmem:[%s134 + $0x290] sm:$0xff]
        %v243 = vld [vmem:[%s134 + $0x298] sm:$0xff]
        %v244 = vld [vmem:[%s134 + $0x2a0] sm:$0xff]
        %v245 = vld [vmem:[%s134 + $0x2a8] sm:$0xff]
        %v246 = vld [vmem:[%s134 + $0x2b0] sm:$0xff]
        %v247 = vld [vmem:[%s134 + $0x2b8] sm:$0xff]
        %v248 = vld [vmem:[%s134 + $0x2c0] sm:$0xff]
        %v249 = vld [vmem:[%s134 + $0x2c8] sm:$0xff]
        %v250 = vld [vmem:[%s134 + $0x2d0] sm:$0xff]
        %v251 = vld [vmem:[%s134 + $0x2d8] sm:$0xff]
        %v252 = vld [vmem:[%s134 + $0x2e0] sm:$0xff]
        %v253 = vld [vmem:[%s134 + $0x2e8] sm:$0xff]
        %v254 = vld [vmem:[%s134 + $0x2f0] sm:$0xff]
        %v255 = vld [vmem:[%s134 + $0x2f8] sm:$0xff]
        %v256 = vld [vmem:[%s134 + $0x300] sm:$0xff]
        %v257 = vld [vmem:[%s134 + $0x308] sm:$0xff]
        %v258 = vld [vmem:[%s134 + $0x310] sm:$0xff]
        %v259 = vld [vmem:[%s134 + $0x318] sm:$0xff]
        %v260 = vld [vmem:[%s134 + $0x320] sm:$0xff]
        %v261 = vld [vmem:[%s134 + $0x328] sm:$0xff]
        %v262 = vld [vmem:[%s134 + $0x330] sm:$0xff]
        %v263 = vld [vmem:[%s134 + $0x338] sm:$0xff]
        %v264 = vld [vmem:[%s134 + $0x340] sm:$0xff]
        %v265 = vld [vmem:[%s134 + $0x348] sm:$0xff]
        %v266 = vld [vmem:[%s134 + $0x350] sm:$0xff]
        %v267 = vld [vmem:[%s134 + $0x358] sm:$0xff]
        %v268 = vld [vmem:[%s134 + $0x360] sm:$0xff]
        %v269 = vld [vmem:[%s134 + $0x368] sm:$0xff]
        %v270 = vld [vmem:[%s134 + $0x370] sm:$0xff]
        %v271 = vld [vmem:[%s134 + $0x378] sm:$0xff]
        %v272 = vld [vmem:[%s134 + $0x380] sm:$0xff]
        %v273 = vld [vmem:[%s134 + $0x388] sm:$0xff]
        %v274 = vld [vmem:[%s134 + $0x390] sm:$0xff]
        %v275 = vld [vmem:[%s134 + $0x398] sm:$0xff]
        %v276 = vld [vmem:[%s134 + $0x3a0] sm:$0xff]
        %v277 = vld [vmem:[%s134 + $0x3a8] sm:$0xff]
        %v278 = vld [vmem:[%s134 + $0x3b0] sm:$0xff]
        %v279 = vld [vmem:[%s134 + $0x3b8] sm:$0xff]
        %v280 = vld [vmem:[%s134 + $0x3c0] sm:$0xff]
        %v281 = vld [vmem:[%s134 + $0x3c8] sm:$0xff]
        %v282 = vld [vmem:[%s134 + $0x3d0] sm:$0xff]
        %v283 = vld [vmem:[%s134 + $0x3d8] sm:$0xff]
        %v284 = vld [vmem:[%s134 + $0x3e0] sm:$0xff]
        %v285 = vld [vmem:[%s134 + $0x3e8] sm:$0xff]
        %v286 = vld [vmem:[%s134 + $0x3f0] sm:$0xff]
        %v287 = vld [vmem:[%s134 + $0x3f8] sm:$0xff]
        %v416 = vunpack.c.l.b16 %v160
        %v417 = vunpack.c.h.b16 %v160
        %v418 = vunpack.c.l.b16 %v161
        %v419 = vunpack.c.h.b16 %v161
        %v420 = vunpack.c.l.b16 %v162
        %v421 = vunpack.c.h.b16 %v162
        %v422 = vunpack.c.l.b16 %v163
        %v423 = vunpack.c.h.b16 %v163
        %v424 = vunpack.c.l.b16 %v164
        %v425 = vunpack.c.h.b16 %v164
        %v426 = vunpack.c.l.b16 %v165
        %v427 = vunpack.c.h.b16 %v165
        %v428 = vunpack.c.l.b16 %v166
        %v429 = vunpack.c.h.b16 %v166
        %v430 = vunpack.c.l.b16 %v167
        %v431 = vunpack.c.h.b16 %v167
        %v432 = vunpack.c.l.b16 %v168
        %v433 = vunpack.c.h.b16 %v168
        %v434 = vunpack.c.l.b16 %v169
        %v435 = vunpack.c.h.b16 %v169
        %v436 = vunpack.c.l.b16 %v170
        %v437 = vunpack.c.h.b16 %v170
        %v438 = vunpack.c.l.b16 %v171
        %v439 = vunpack.c.h.b16 %v171
        %v440 = vunpack.c.l.b16 %v172
        %v441 = vunpack.c.h.b16 %v172
        %v442 = vunpack.c.l.b16 %v173
        %v443 = vunpack.c.h.b16 %v173
        %v444 = vunpack.c.l.b16 %v174
        %v445 = vunpack.c.h.b16 %v174
        %v446 = vunpack.c.l.b16 %v175
        %v447 = vunpack.c.h.b16 %v175
        %v448 = vunpack.c.l.b16 %v176
        %v449 = vunpack.c.h.b16 %v176
        %v450 = vunpack.c.l.b16 %v177
        %v451 = vunpack.c.h.b16 %v177
        %v452 = vunpack.c.l.b16 %v178
        %v453 = vunpack.c.h.b16 %v178
        %v454 = vunpack.c.l.b16 %v179
        %v455 = vunpack.c.h.b16 %v179
        %v456 = vunpack.c.l.b16 %v180
        %v457 = vunpack.c.h.b16 %v180
        %v458 = vunpack.c.l.b16 %v181
        %v459 = vunpack.c.h.b16 %v181
        %v460 = vunpack.c.l.b16 %v182
        %v461 = vunpack.c.h.b16 %v182
        %v462 = vunpack.c.l.b16 %v183
        %v463 = vunpack.c.h.b16 %v183
        %v464 = vunpack.c.l.b16 %v184
        %v465 = vunpack.c.h.b16 %v184
        %v466 = vunpack.c.l.b16 %v185
        %v467 = vunpack.c.h.b16 %v185
        %v468 = vunpack.c.l.b16 %v186
        %v469 = vunpack.c.h.b16 %v186
        %v470 = vunpack.c.l.b16 %v187
        %v471 = vunpack.c.h.b16 %v187
        %v472 = vunpack.c.l.b16 %v188
        %v473 = vunpack.c.h.b16 %v188
        %v474 = vunpack.c.l.b16 %v189
        %v475 = vunpack.c.h.b16 %v189
        %v476 = vunpack.c.l.b16 %v190
        %v477 = vunpack.c.h.b16 %v190
        %v478 = vunpack.c.l.b16 %v191
        %v479 = vunpack.c.h.b16 %v191
        %v480 = vunpack.c.l.b16 %v192
        %v481 = vunpack.c.h.b16 %v192
        %v482 = vunpack.c.l.b16 %v193
        %v483 = vunpack.c.h.b16 %v193
        %v484 = vunpack.c.l.b16 %v194
        %v485 = vunpack.c.h.b16 %v194
        %v486 = vunpack.c.l.b16 %v195
        %v487 = vunpack.c.h.b16 %v195
        %v488 = vunpack.c.l.b16 %v196
        %v489 = vunpack.c.h.b16 %v196
        %v490 = vunpack.c.l.b16 %v197
        %v491 = vunpack.c.h.b16 %v197
        %v492 = vunpack.c.l.b16 %v198
        %v493 = vunpack.c.h.b16 %v198
        %v494 = vunpack.c.l.b16 %v199
        %v495 = vunpack.c.h.b16 %v199
        %v496 = vunpack.c.l.b16 %v200
        %v497 = vunpack.c.h.b16 %v200
        %v498 = vunpack.c.l.b16 %v201
        %v499 = vunpack.c.h.b16 %v201
        %v500 = vunpack.c.l.b16 %v202
        %v501 = vunpack.c.h.b16 %v202
        %v502 = vunpack.c.l.b16 %v203
        %v503 = vunpack.c.h.b16 %v203
        %v504 = vunpack.c.l.b16 %v204
        %v505 = vunpack.c.h.b16 %v204
        %v506 = vunpack.c.l.b16 %v205
        %v507 = vunpack.c.h.b16 %v205
        %v508 = vunpack.c.l.b16 %v206
        %v509 = vunpack.c.h.b16 %v206
        %v510 = vunpack.c.l.b16 %v207
        %v511 = vunpack.c.h.b16 %v207
        %v512 = vunpack.c.l.b16 %v208
        %v513 = vunpack.c.h.b16 %v208
        %v514 = vunpack.c.l.b16 %v209
        %v515 = vunpack.c.h.b16 %v209
        %v516 = vunpack.c.l.b16 %v210
        %v517 = vunpack.c.h.b16 %v210
        %v518 = vunpack.c.l.b16 %v211
        %v519 = vunpack.c.h.b16 %v211
        %v520 = vunpack.c.l.b16 %v212
        %v521 = vunpack.c.h.b16 %v212
        %v522 = vunpack.c.l.b16 %v213
        %v523 = vunpack.c.h.b16 %v213
        %v524 = vunpack.c.l.b16 %v214
        %v525 = vunpack.c.h.b16 %v214
        %v526 = vunpack.c.l.b16 %v215
        %v527 = vunpack.c.h.b16 %v215
        %v528 = vunpack.c.l.b16 %v216
        %v529 = vunpack.c.h.b16 %v216
        %v530 = vunpack.c.l.b16 %v217
        %v531 = vunpack.c.h.b16 %v217
        %v532 = vunpack.c.l.b16 %v218
        %v533 = vunpack.c.h.b16 %v218
        %v534 = vunpack.c.l.b16 %v219
        %v535 = vunpack.c.h.b16 %v219
        %v536 = vunpack.c.l.b16 %v220
        %v537 = vunpack.c.h.b16 %v220
        %v538 = vunpack.c.l.b16 %v221
        %v539 = vunpack.c.h.b16 %v221
        %v540 = vunpack.c.l.b16 %v222
        %v541 = vunpack.c.h.b16 %v222
        %v542 = vunpack.c.l.b16 %v223
        %v543 = vunpack.c.h.b16 %v223
        %v544 = vunpack.c.l.b16 %v224
        %v545 = vunpack.c.h.b16 %v224
        %v546 = vunpack.c.l.b16 %v225
        %v547 = vunpack.c.h.b16 %v225
        %v548 = vunpack.c.l.b16 %v226
        %v549 = vunpack.c.h.b16 %v226
        %v550 = vunpack.c.l.b16 %v227
        %v551 = vunpack.c.h.b16 %v227
        %v552 = vunpack.c.l.b16 %v228
        %v553 = vunpack.c.h.b16 %v228
        %v554 = vunpack.c.l.b16 %v229
        %v555 = vunpack.c.h.b16 %v229
        %v556 = vunpack.c.l.b16 %v230
        %v557 = vunpack.c.h.b16 %v230
        %v558 = vunpack.c.l.b16 %v231
        %v559 = vunpack.c.h.b16 %v231
        %v560 = vunpack.c.l.b16 %v232
        %v561 = vunpack.c.h.b16 %v232
        %v562 = vunpack.c.l.b16 %v233
        %v563 = vunpack.c.h.b16 %v233
        %v564 = vunpack.c.l.b16 %v234
        %v565 = vunpack.c.h.b16 %v234
        %v566 = vunpack.c.l.b16 %v235
        %v567 = vunpack.c.h.b16 %v235
        %v568 = vunpack.c.l.b16 %v236
        %v569 = vunpack.c.h.b16 %v236
        %v570 = vunpack.c.l.b16 %v237
        %v571 = vunpack.c.h.b16 %v237
        %v572 = vunpack.c.l.b16 %v238
        %v573 = vunpack.c.h.b16 %v238
        %v574 = vunpack.c.l.b16 %v239
        %v575 = vunpack.c.h.b16 %v239
        %v576 = vunpack.c.l.b16 %v240
        %v577 = vunpack.c.h.b16 %v240
        %v578 = vunpack.c.l.b16 %v241
        %v579 = vunpack.c.h.b16 %v241
        %v580 = vunpack.c.l.b16 %v242
        %v581 = vunpack.c.h.b16 %v242
        %v582 = vunpack.c.l.b16 %v243
        %v583 = vunpack.c.h.b16 %v243
        %v584 = vunpack.c.l.b16 %v244
        %v585 = vunpack.c.h.b16 %v244
        %v586 = vunpack.c.l.b16 %v245
        %v587 = vunpack.c.h.b16 %v245
        %v588 = vunpack.c.l.b16 %v246
        %v589 = vunpack.c.h.b16 %v246
        %v590 = vunpack.c.l.b16 %v247
        %v591 = vunpack.c.h.b16 %v247
        %v592 = vunpack.c.l.b16 %v248
        %v593 = vunpack.c.h.b16 %v248
        %v594 = vunpack.c.l.b16 %v249
        %v595 = vunpack.c.h.b16 %v249
        %v596 = vunpack.c.l.b16 %v250
        %v597 = vunpack.c.h.b16 %v250
        %v598 = vunpack.c.l.b16 %v251
        %v599 = vunpack.c.h.b16 %v251
        %v600 = vunpack.c.l.b16 %v252
        %v601 = vunpack.c.h.b16 %v252
        %v602 = vunpack.c.l.b16 %v253
        %v603 = vunpack.c.h.b16 %v253
        %v604 = vunpack.c.l.b16 %v254
        %v605 = vunpack.c.h.b16 %v254
        %v606 = vunpack.c.l.b16 %v255
        %v607 = vunpack.c.h.b16 %v255
        %v608 = vunpack.c.l.b16 %v256
        %v609 = vunpack.c.h.b16 %v256
        %v610 = vunpack.c.l.b16 %v257
        %v611 = vunpack.c.h.b16 %v257
        %v612 = vunpack.c.l.b16 %v258
        %v613 = vunpack.c.h.b16 %v258
        %v614 = vunpack.c.l.b16 %v259
        %v615 = vunpack.c.h.b16 %v259
        %v616 = vunpack.c.l.b16 %v260
        %v617 = vunpack.c.h.b16 %v260
        %v618 = vunpack.c.l.b16 %v261
        %v619 = vunpack.c.h.b16 %v261
        %v620 = vunpack.c.l.b16 %v262
        %v621 = vunpack.c.h.b16 %v262
        %v622 = vunpack.c.l.b16 %v263
        %v623 = vunpack.c.h.b16 %v263
        %v624 = vunpack.c.l.b16 %v264
        %v625 = vunpack.c.h.b16 %v264
        %v626 = vunpack.c.l.b16 %v265
        %v627 = vunpack.c.h.b16 %v265
        %v628 = vunpack.c.l.b16 %v266
        %v629 = vunpack.c.h.b16 %v266
        %v630 = vunpack.c.l.b16 %v267
        %v631 = vunpack.c.h.b16 %v267
        %v632 = vunpack.c.l.b16 %v268
        %v633 = vunpack.c.h.b16 %v268
        %v634 = vunpack.c.l.b16 %v269
        %v635 = vunpack.c.h.b16 %v269
        %v636 = vunpack.c.l.b16 %v270
        %v637 = vunpack.c.h.b16 %v270
        %v638 = vunpack.c.l.b16 %v271
        %v639 = vunpack.c.h.b16 %v271
        %v640 = vunpack.c.l.b16 %v272
        %v641 = vunpack.c.h.b16 %v272
        %v642 = vunpack.c.l.b16 %v273
        %v643 = vunpack.c.h.b16 %v273
        %v644 = vunpack.c.l.b16 %v274
        %v645 = vunpack.c.h.b16 %v274
        %v646 = vunpack.c.l.b16 %v275
        %v647 = vunpack.c.h.b16 %v275
        %v648 = vunpack.c.l.b16 %v276
        %v649 = vunpack.c.h.b16 %v276
        %v650 = vunpack.c.l.b16 %v277
        %v651 = vunpack.c.h.b16 %v277
        %v652 = vunpack.c.l.b16 %v278
        %v653 = vunpack.c.h.b16 %v278
        %v654 = vunpack.c.l.b16 %v279
        %v655 = vunpack.c.h.b16 %v279
        %v656 = vunpack.c.l.b16 %v280
        %v657 = vunpack.c.h.b16 %v280
        %v658 = vunpack.c.l.b16 %v281
        %v659 = vunpack.c.h.b16 %v281
        %v660 = vunpack.c.l.b16 %v282
        %v661 = vunpack.c.h.b16 %v282
        %v662 = vunpack.c.l.b16 %v283
        %v663 = vunpack.c.h.b16 %v283
        %v664 = vunpack.c.l.b16 %v284
        %v665 = vunpack.c.h.b16 %v284
        %v666 = vunpack.c.l.b16 %v285
        %v667 = vunpack.c.h.b16 %v285
        %v668 = vunpack.c.l.b16 %v286
        %v669 = vunpack.c.h.b16 %v286
        %v670 = vunpack.c.l.b16 %v287
        %v671 = vunpack.c.h.b16 %v287
        %v672 = vpack.c.b16 %v432, %v416
        %v673 = vpack.c.b16 %v433, %v417
        %v674 = vpack.c.b16 %v434, %v418
        %v675 = vpack.c.b16 %v435, %v419
        %v676 = vpack.c.b16 %v436, %v420
        %v677 = vpack.c.b16 %v437, %v421
        %v678 = vpack.c.b16 %v438, %v422
        %v679 = vpack.c.b16 %v439, %v423
        %v680 = vpack.c.b16 %v440, %v424
        %v681 = vpack.c.b16 %v441, %v425
        %v682 = vpack.c.b16 %v442, %v426
        %v683 = vpack.c.b16 %v443, %v427
        %v684 = vpack.c.b16 %v444, %v428
        %v685 = vpack.c.b16 %v445, %v429
        %v686 = vpack.c.b16 %v446, %v430
        %v687 = vpack.c.b16 %v447, %v431
        %v688 = vpack.c.b16 %v464, %v448
        %v689 = vpack.c.b16 %v465, %v449
        %v690 = vpack.c.b16 %v466, %v450
        %v691 = vpack.c.b16 %v467, %v451
        %v692 = vpack.c.b16 %v468, %v452
        %v693 = vpack.c.b16 %v469, %v453
        %v694 = vpack.c.b16 %v470, %v454
        %v695 = vpack.c.b16 %v471, %v455
        %v696 = vpack.c.b16 %v472, %v456
        %v697 = vpack.c.b16 %v473, %v457
        %v698 = vpack.c.b16 %v474, %v458
        %v699 = vpack.c.b16 %v475, %v459
        %v700 = vpack.c.b16 %v476, %v460
        %v701 = vpack.c.b16 %v477, %v461
        %v702 = vpack.c.b16 %v478, %v462
        %v703 = vpack.c.b16 %v479, %v463
        %v704 = vpack.c.b16 %v496, %v480
        %v705 = vpack.c.b16 %v497, %v481
        %v706 = vpack.c.b16 %v498, %v482
        %v707 = vpack.c.b16 %v499, %v483
        %v708 = vpack.c.b16 %v500, %v484
        %v709 = vpack.c.b16 %v501, %v485
        %v710 = vpack.c.b16 %v502, %v486
        %v711 = vpack.c.b16 %v503, %v487
        %v712 = vpack.c.b16 %v504, %v488
        %v713 = vpack.c.b16 %v505, %v489
        %v714 = vpack.c.b16 %v506, %v490
        %v715 = vpack.c.b16 %v507, %v491
        %v716 = vpack.c.b16 %v508, %v492
        %v717 = vpack.c.b16 %v509, %v493
        %v718 = vpack.c.b16 %v510, %v494
        %v719 = vpack.c.b16 %v511, %v495
        %v720 = vpack.c.b16 %v528, %v512
        %v721 = vpack.c.b16 %v529, %v513
        %v722 = vpack.c.b16 %v530, %v514
        %v723 = vpack.c.b16 %v531, %v515
        %v724 = vpack.c.b16 %v532, %v516
        %v725 = vpack.c.b16 %v533, %v517
        %v726 = vpack.c.b16 %v534, %v518
        %v727 = vpack.c.b16 %v535, %v519
        %v728 = vpack.c.b16 %v536, %v520
        %v729 = vpack.c.b16 %v537, %v521
        %v730 = vpack.c.b16 %v538, %v522
        %v731 = vpack.c.b16 %v539, %v523
        %v732 = vpack.c.b16 %v540, %v524
        %v733 = vpack.c.b16 %v541, %v525
        %v734 = vpack.c.b16 %v542, %v526
        %v735 = vpack.c.b16 %v543, %v527
        %v736 = vpack.c.b16 %v560, %v544
        %v737 = vpack.c.b16 %v561, %v545
        %v738 = vpack.c.b16 %v562, %v546
        %v739 = vpack.c.b16 %v563, %v547
        %v740 = vpack.c.b16 %v564, %v548
        %v741 = vpack.c.b16 %v565, %v549
        %v742 = vpack.c.b16 %v566, %v550
        %v743 = vpack.c.b16 %v567, %v551
        %v744 = vpack.c.b16 %v568, %v552
        %v745 = vpack.c.b16 %v569, %v553
        %v746 = vpack.c.b16 %v570, %v554
        %v747 = vpack.c.b16 %v571, %v555
        %v748 = vpack.c.b16 %v572, %v556
        %v749 = vpack.c.b16 %v573, %v557
        %v750 = vpack.c.b16 %v574, %v558
        %v751 = vpack.c.b16 %v575, %v559
        %v752 = vpack.c.b16 %v592, %v576
        %v753 = vpack.c.b16 %v593, %v577
        %v754 = vpack.c.b16 %v594, %v578
        %v755 = vpack.c.b16 %v595, %v579
        %v756 = vpack.c.b16 %v596, %v580
        %v757 = vpack.c.b16 %v597, %v581
        %v758 = vpack.c.b16 %v598, %v582
        %v759 = vpack.c.b16 %v599, %v583
        %v760 = vpack.c.b16 %v600, %v584
        %v761 = vpack.c.b16 %v601, %v585
        %v762 = vpack.c.b16 %v602, %v586
        %v763 = vpack.c.b16 %v603, %v587
        %v764 = vpack.c.b16 %v604, %v588
        %v765 = vpack.c.b16 %v605, %v589
        %v766 = vpack.c.b16 %v606, %v590
        %v767 = vpack.c.b16 %v607, %v591
        %v768 = vpack.c.b16 %v624, %v608
        %v769 = vpack.c.b16 %v625, %v609
        %v770 = vpack.c.b16 %v626, %v610
        %v771 = vpack.c.b16 %v627, %v611
        %v772 = vpack.c.b16 %v628, %v612
        %v773 = vpack.c.b16 %v629, %v613
        %v774 = vpack.c.b16 %v630, %v614
        %v775 = vpack.c.b16 %v631, %v615
        %v776 = vpack.c.b16 %v632, %v616
        %v777 = vpack.c.b16 %v633, %v617
        %v778 = vpack.c.b16 %v634, %v618
        %v779 = vpack.c.b16 %v635, %v619
        %v780 = vpack.c.b16 %v636, %v620
        %v781 = vpack.c.b16 %v637, %v621
        %v782 = vpack.c.b16 %v638, %v622
        %v783 = vpack.c.b16 %v639, %v623
        %v784 = vpack.c.b16 %v656, %v640
        %v785 = vpack.c.b16 %v657, %v641
        %v786 = vpack.c.b16 %v658, %v642
        %v787 = vpack.c.b16 %v659, %v643
        %v788 = vpack.c.b16 %v660, %v644
        %v789 = vpack.c.b16 %v661, %v645
        %v790 = vpack.c.b16 %v662, %v646
        %v791 = vpack.c.b16 %v663, %v647
        %v792 = vpack.c.b16 %v664, %v648
        %v793 = vpack.c.b16 %v665, %v649
        %v794 = vpack.c.b16 %v666, %v650
        %v795 = vpack.c.b16 %v667, %v651
        %v796 = vpack.c.b16 %v668, %v652
        %v797 = vpack.c.b16 %v669, %v653
        %v798 = vpack.c.b16 %v670, %v654
        %v799 = vpack.c.b16 %v671, %v655
        %928 = vmatprep.subr.bf16.mxu0 %v673
        %929 = vmatpush1.bf16.msra.mxu0 %v672
        %930 = vmatprep.subr.bf16.mxu0 %v689
        %931 = vmatpush1.bf16.msra.mxu0 %v688
        %932 = vmatprep.subr.bf16.mxu0 %v705
        %933 = vmatpush1.bf16.msra.mxu0 %v704
        %934 = vmatprep.subr.bf16.mxu0 %v721
        %935 = vmatpush1.bf16.msra.mxu0 %v720
        %936 = vmatprep.subr.bf16.mxu0 %v737
        %937 = vmatpush1.bf16.msra.mxu0 %v736
        %938 = vmatprep.subr.bf16.mxu0 %v753
        %939 = vmatpush1.bf16.msra.mxu0 %v752
        %940 = vmatprep.subr.bf16.mxu0 %v769
        %941 = vmatpush1.bf16.msra.mxu0 %v768
        %942 = vmatprep.subr.bf16.mxu0 %v785
        %943 = vmatpush1.bf16.msra.mxu0 %v784
        %944 = vmatprep.subr.bf16.mxu0 0
        %945 = vmatpush1.bf16.msra.mxu0 0
        %946 = vmatprep.subr.bf16.mxu0 0
        %947 = vmatpush1.bf16.msra.mxu0 0
        %948 = vmatprep.subr.bf16.mxu0 0
        %949 = vmatpush1.bf16.msra.mxu0 0
        %950 = vmatprep.subr.bf16.mxu0 0
        %951 = vmatpush1.bf16.msra.mxu0 0
        %952 = vmatprep.subr.bf16.mxu0 0
        %953 = vmatpush1.bf16.msra.mxu0 0
        %954 = vmatprep.subr.bf16.mxu0 0
        %955 = vmatpush1.bf16.msra.mxu0 0
        %956 = vmatprep.subr.bf16.mxu0 0
        %957 = vmatpush1.bf16.msra.mxu0 0
        %958 = vmatprep.subr.bf16.mxu0 0
        %959 = vmatpush1.bf16.msra.mxu0 0
        %960 = vmatprep.mubr.bf16.mxu0 0
        %961 = vmatmul.mubr.bf16.gmra.mrb[0].mxu0 %v159
        %v962 = vpop.f32.mrb[0].mxu0
        %v963 = vadd.f32 0.0, %v962
        %v964 = vpop.f32.mrb[0].mxu0
        %v965 = vadd.f32 0.0, %v964
        %v966 = vpop.f32.mrb[0].mxu0
        %v967 = vpop.f32.mrb[0].mxu0
        %968 = vdwg.mxu0
        %969 = vmatprep.subr.bf16.mxu0 %v675
        %970 = vmatpush1.bf16.msra.mxu0 %v674
        %971 = vmatprep.subr.bf16.mxu0 %v691
        %972 = vmatpush1.bf16.msra.mxu0 %v690
        %973 = vmatprep.subr.bf16.mxu0 %v707
        %974 = vmatpush1.bf16.msra.mxu0 %v706
        %975 = vmatprep.subr.bf16.mxu0 %v723
        %976 = vmatpush1.bf16.msra.mxu0 %v722
        %977 = vmatprep.subr.bf16.mxu0 %v739
        %978 = vmatpush1.bf16.msra.mxu0 %v738
        %979 = vmatprep.subr.bf16.mxu0 %v755
        %980 = vmatpush1.bf16.msra.mxu0 %v754
        %981 = vmatprep.subr.bf16.mxu0 %v771
        %982 = vmatpush1.bf16.msra.mxu0 %v770
        %983 = vmatprep.subr.bf16.mxu0 %v787
        %984 = vmatpush1.bf16.msra.mxu0 %v786
        %985 = vmatprep.subr.bf16.mxu0 0
        %986 = vmatpush1.bf16.msra.mxu0 0
        %987 = vmatprep.subr.bf16.mxu0 0
        %988 = vmatpush1.bf16.msra.mxu0 0
        %989 = vmatprep.subr.bf16.mxu0 0
        %990 = vmatpush1.bf16.msra.mxu0 0
        %991 = vmatprep.subr.bf16.mxu0 0
        %992 = vmatpush1.bf16.msra.mxu0 0
        %993 = vmatprep.subr.bf16.mxu0 0
        %994 = vmatpush1.bf16.msra.mxu0 0
        %995 = vmatprep.subr.bf16.mxu0 0
        %996 = vmatpush1.bf16.msra.mxu0 0
        %997 = vmatprep.subr.bf16.mxu0 0
        %998 = vmatpush1.bf16.msra.mxu0 0
        %999 = vmatprep.subr.bf16.mxu0 0
        %1000 = vmatpush1.bf16.msra.mxu0 0
        %1001 = vmatprep.mubr.bf16.mxu0 0
        %1002 = vmatmul.mubr.bf16.gmra.mrb[0].mxu0 %v159
        %v1003 = vpop.f32.mrb[0].mxu0
        %v1004 = vadd.f32 0.0, %v1003
        %v1005 = vpop.f32.mrb[0].mxu0
        %v1006 = vadd.f32 0.0, %v1005
        %v1007 = vpop.f32.mrb[0].mxu0
        %v1008 = vpop.f32.mrb[0].mxu0
        %1009 = vdwg.mxu0
        %1010 = vmatprep.subr.bf16.mxu0 %v677
        %1011 = vmatpush1.bf16.msra.mxu0 %v676
        %1012 = vmatprep.subr.bf16.mxu0 %v693
        %1013 = vmatpush1.bf16.msra.mxu0 %v692
        %1014 = vmatprep.subr.bf16.mxu0 %v709
        %1015 = vmatpush1.bf16.msra.mxu0 %v708
        %1016 = vmatprep.subr.bf16.mxu0 %v725
        %1017 = vmatpush1.bf16.msra.mxu0 %v724
        %1018 = vmatprep.subr.bf16.mxu0 %v741
        %1019 = vmatpush1.bf16.msra.mxu0 %v740
        %1020 = vmatprep.subr.bf16.mxu0 %v757
        %1021 = vmatpush1.bf16.msra.mxu0 %v756
        %1022 = vmatprep.subr.bf16.mxu0 %v773
        %1023 = vmatpush1.bf16.msra.mxu0 %v772
        %1024 = vmatprep.subr.bf16.mxu0 %v789
        %1025 = vmatpush1.bf16.msra.mxu0 %v788
        %1026 = vmatprep.subr.bf16.mxu0 0
        %1027 = vmatpush1.bf16.msra.mxu0 0
        %1028 = vmatprep.subr.bf16.mxu0 0
        %1029 = vmatpush1.bf16.msra.mxu0 0
        %1030 = vmatprep.subr.bf16.mxu0 0
        %1031 = vmatpush1.bf16.msra.mxu0 0
        %1032 = vmatprep.subr.bf16.mxu0 0
        %1033 = vmatpush1.bf16.msra.mxu0 0
        %1034 = vmatprep.subr.bf16.mxu0 0
        %1035 = vmatpush1.bf16.msra.mxu0 0
        %1036 = vmatprep.subr.bf16.mxu0 0
        %1037 = vmatpush1.bf16.msra.mxu0 0
        %1038 = vmatprep.subr.bf16.mxu0 0
        %1039 = vmatpush1.bf16.msra.mxu0 0
        %1040 = vmatprep.subr.bf16.mxu0 0
        %1041 = vmatpush1.bf16.msra.mxu0 0
        %1042 = vmatprep.mubr.bf16.mxu0 0
        %1043 = vmatmul.mubr.bf16.gmra.mrb[0].mxu0 %v159
        %v1044 = vpop.f32.mrb[0].mxu0
        %v1045 = vadd.f32 0.0, %v1044
        %v1046 = vpop.f32.mrb[0].mxu0
        %v1047 = vadd.f32 0.0, %v1046
        %v1048 = vpop.f32.mrb[0].mxu0
        %v1049 = vpop.f32.mrb[0].mxu0
        %1050 = vdwg.mxu0
        %1051 = vmatprep.subr.bf16.mxu0 %v679
        %1052 = vmatpush1.bf16.msra.mxu0 %v678
        %1053 = vmatprep.subr.bf16.mxu0 %v695
        %1054 = vmatpush1.bf16.msra.mxu0 %v694
        %1055 = vmatprep.subr.bf16.mxu0 %v711
        %1056 = vmatpush1.bf16.msra.mxu0 %v710
        %1057 = vmatprep.subr.bf16.mxu0 %v727
        %1058 = vmatpush1.bf16.msra.mxu0 %v726
        %1059 = vmatprep.subr.bf16.mxu0 %v743
        %1060 = vmatpush1.bf16.msra.mxu0 %v742
        %1061 = vmatprep.subr.bf16.mxu0 %v759
        %1062 = vmatpush1.bf16.msra.mxu0 %v758
        %1063 = vmatprep.subr.bf16.mxu0 %v775
        %1064 = vmatpush1.bf16.msra.mxu0 %v774
        %1065 = vmatprep.subr.bf16.mxu0 %v791
        %1066 = vmatpush1.bf16.msra.mxu0 %v790
        %1067 = vmatprep.subr.bf16.mxu0 0
        %1068 = vmatpush1.bf16.msra.mxu0 0
        %1069 = vmatprep.subr.bf16.mxu0 0
        %1070 = vmatpush1.bf16.msra.mxu0 0
        %1071 = vmatprep.subr.bf16.mxu0 0
        %1072 = vmatpush1.bf16.msra.mxu0 0
        %1073 = vmatprep.subr.bf16.mxu0 0
        %1074 = vmatpush1.bf16.msra.mxu0 0
        %1075 = vmatprep.subr.bf16.mxu0 0
        %1076 = vmatpush1.bf16.msra.mxu0 0
        %1077 = vmatprep.subr.bf16.mxu0 0
        %1078 = vmatpush1.bf16.msra.mxu0 0
        %1079 = vmatprep.subr.bf16.mxu0 0
        %1080 = vmatpush1.bf16.msra.mxu0 0
        %1081 = vmatprep.subr.bf16.mxu0 0
        %1082 = vmatpush1.bf16.msra.mxu0 0
        %1083 = vmatprep.mubr.bf16.mxu0 0
        %1084 = vmatmul.mubr.bf16.gmra.mrb[0].mxu0 %v159
        %v1085 = vpop.f32.mrb[0].mxu0
        %v1086 = vadd.f32 0.0, %v1085
        %v1087 = vpop.f32.mrb[0].mxu0
        %v1088 = vadd.f32 0.0, %v1087
        %v1089 = vpop.f32.mrb[0].mxu0
        %v1090 = vpop.f32.mrb[0].mxu0
        %1091 = vdwg.mxu0
        %1092 = vmatprep.subr.bf16.mxu0 %v681
        %1093 = vmatpush1.bf16.msra.mxu0 %v680
        %1094 = vmatprep.subr.bf16.mxu0 %v697
        %1095 = vmatpush1.bf16.msra.mxu0 %v696
        %1096 = vmatprep.subr.bf16.mxu0 %v713
        %1097 = vmatpush1.bf16.msra.mxu0 %v712
        %1098 = vmatprep.subr.bf16.mxu0 %v729
        %1099 = vmatpush1.bf16.msra.mxu0 %v728
        %1100 = vmatprep.subr.bf16.mxu0 %v745
        %1101 = vmatpush1.bf16.msra.mxu0 %v744
        %1102 = vmatprep.subr.bf16.mxu0 %v761
        %1103 = vmatpush1.bf16.msra.mxu0 %v760
        %1104 = vmatprep.subr.bf16.mxu0 %v777
        %1105 = vmatpush1.bf16.msra.mxu0 %v776
        %1106 = vmatprep.subr.bf16.mxu0 %v793
        %1107 = vmatpush1.bf16.msra.mxu0 %v792
        %1108 = vmatprep.subr.bf16.mxu0 0
        %1109 = vmatpush1.bf16.msra.mxu0 0
        %1110 = vmatprep.subr.bf16.mxu0 0
        %1111 = vmatpush1.bf16.msra.mxu0 0
        %1112 = vmatprep.subr.bf16.mxu0 0
        %1113 = vmatpush1.bf16.msra.mxu0 0
        %1114 = vmatprep.subr.bf16.mxu0 0
        %1115 = vmatpush1.bf16.msra.mxu0 0
        %1116 = vmatprep.subr.bf16.mxu0 0
        %1117 = vmatpush1.bf16.msra.mxu0 0
        %1118 = vmatprep.subr.bf16.mxu0 0
        %1119 = vmatpush1.bf16.msra.mxu0 0
        %1120 = vmatprep.subr.bf16.mxu0 0
        %1121 = vmatpush1.bf16.msra.mxu0 0
        %1122 = vmatprep.subr.bf16.mxu0 0
        %1123 = vmatpush1.bf16.msra.mxu0 0
        %1124 = vmatprep.mubr.bf16.mxu0 0
        %1125 = vmatmul.mubr.bf16.gmra.mrb[0].mxu0 %v159
        %v1126 = vpop.f32.mrb[0].mxu0
        %v1127 = vadd.f32 0.0, %v1126
        %v1128 = vpop.f32.mrb[0].mxu0
        %v1129 = vadd.f32 0.0, %v1128
        %v1130 = vpop.f32.mrb[0].mxu0
        %v1131 = vpop.f32.mrb[0].mxu0
        %1132 = vdwg.mxu0
        %1133 = vmatprep.subr.bf16.mxu0 %v683
        %1134 = vmatpush1.bf16.msra.mxu0 %v682
        %1135 = vmatprep.subr.bf16.mxu0 %v699
        %1136 = vmatpush1.bf16.msra.mxu0 %v698
        %1137 = vmatprep.subr.bf16.mxu0 %v715
        %1138 = vmatpush1.bf16.msra.mxu0 %v714
        %1139 = vmatprep.subr.bf16.mxu0 %v731
        %1140 = vmatpush1.bf16.msra.mxu0 %v730
        %1141 = vmatprep.subr.bf16.mxu0 %v747
        %1142 = vmatpush1.bf16.msra.mxu0 %v746
        %1143 = vmatprep.subr.bf16.mxu0 %v763
        %1144 = vmatpush1.bf16.msra.mxu0 %v762
        %1145 = vmatprep.subr.bf16.mxu0 %v779
        %1146 = vmatpush1.bf16.msra.mxu0 %v778
        %1147 = vmatprep.subr.bf16.mxu0 %v795
        %1148 = vmatpush1.bf16.msra.mxu0 %v794
        %1149 = vmatprep.subr.bf16.mxu0 0
        %1150 = vmatpush1.bf16.msra.mxu0 0
        %1151 = vmatprep.subr.bf16.mxu0 0
        %1152 = vmatpush1.bf16.msra.mxu0 0
        %1153 = vmatprep.subr.bf16.mxu0 0
        %1154 = vmatpush1.bf16.msra.mxu0 0
        %1155 = vmatprep.subr.bf16.mxu0 0
        %1156 = vmatpush1.bf16.msra.mxu0 0
        %1157 = vmatprep.subr.bf16.mxu0 0
        %1158 = vmatpush1.bf16.msra.mxu0 0
        %1159 = vmatprep.subr.bf16.mxu0 0
        %1160 = vmatpush1.bf16.msra.mxu0 0
        %1161 = vmatprep.subr.bf16.mxu0 0
        %1162 = vmatpush1.bf16.msra.mxu0 0
        %1163 = vmatprep.subr.bf16.mxu0 0
        %1164 = vmatpush1.bf16.msra.mxu0 0
        %1165 = vmatprep.mubr.bf16.mxu0 0
        %1166 = vmatmul.mubr.bf16.gmra.mrb[0].mxu0 %v159
        %v1167 = vpop.f32.mrb[0].mxu0
        %v1168 = vadd.f32 0.0, %v1167
        %v1169 = vpop.f32.mrb[0].mxu0
        %v1170 = vadd.f32 0.0, %v1169
        %v1171 = vpop.f32.mrb[0].mxu0
        %v1172 = vpop.f32.mrb[0].mxu0
        %1173 = vdwg.mxu0
        %1174 = vmatprep.subr.bf16.mxu0 %v685
        %1175 = vmatpush1.bf16.msra.mxu0 %v684
        %1176 = vmatprep.subr.bf16.mxu0 %v701
        %1177 = vmatpush1.bf16.msra.mxu0 %v700
        %1178 = vmatprep.subr.bf16.mxu0 %v717
        %1179 = vmatpush1.bf16.msra.mxu0 %v716
        %1180 = vmatprep.subr.bf16.mxu0 %v733
        %1181 = vmatpush1.bf16.msra.mxu0 %v732
        %1182 = vmatprep.subr.bf16.mxu0 %v749
        %1183 = vmatpush1.bf16.msra.mxu0 %v748
        %1184 = vmatprep.subr.bf16.mxu0 %v765
        %1185 = vmatpush1.bf16.msra.mxu0 %v764
        %1186 = vmatprep.subr.bf16.mxu0 %v781
        %1187 = vmatpush1.bf16.msra.mxu0 %v780
        %1188 = vmatprep.subr.bf16.mxu0 %v797
        %1189 = vmatpush1.bf16.msra.mxu0 %v796
        %1190 = vmatprep.subr.bf16.mxu0 0
        %1191 = vmatpush1.bf16.msra.mxu0 0
        %1192 = vmatprep.subr.bf16.mxu0 0
        %1193 = vmatpush1.bf16.msra.mxu0 0
        %1194 = vmatprep.subr.bf16.mxu0 0
        %1195 = vmatpush1.bf16.msra.mxu0 0
        %1196 = vmatprep.subr.bf16.mxu0 0
        %1197 = vmatpush1.bf16.msra.mxu0 0
        %1198 = vmatprep.subr.bf16.mxu0 0
        %1199 = vmatpush1.bf16.msra.mxu0 0
        %1200 = vmatprep.subr.bf16.mxu0 0
        %1201 = vmatpush1.bf16.msra.mxu0 0
        %1202 = vmatprep.subr.bf16.mxu0 0
        %1203 = vmatpush1.bf16.msra.mxu0 0
        %1204 = vmatprep.subr.bf16.mxu0 0
        %1205 = vmatpush1.bf16.msra.mxu0 0
        %1206 = vmatprep.mubr.bf16.mxu0 0
        %1207 = vmatmul.mubr.bf16.gmra.mrb[0].mxu0 %v159
        %v1208 = vpop.f32.mrb[0].mxu0
        %v1209 = vadd.f32 0.0, %v1208
        %v1210 = vpop.f32.mrb[0].mxu0
        %v1211 = vadd.f32 0.0, %v1210
        %v1212 = vpop.f32.mrb[0].mxu0
        %v1213 = vpop.f32.mrb[0].mxu0
        %1214 = vdwg.mxu0
        %1215 = vmatprep.subr.bf16.mxu0 %v687
        %1216 = vmatpush1.bf16.msra.mxu0 %v686
        %1217 = vmatprep.subr.bf16.mxu0 %v703
        %1218 = vmatpush1.bf16.msra.mxu0 %v702
        %1219 = vmatprep.subr.bf16.mxu0 %v719
        %1220 = vmatpush1.bf16.msra.mxu0 %v718
        %1221 = vmatprep.subr.bf16.mxu0 %v735
        %1222 = vmatpush1.bf16.msra.mxu0 %v734
        %1223 = vmatprep.subr.bf16.mxu0 %v751
        %1224 = vmatpush1.bf16.msra.mxu0 %v750
        %1225 = vmatprep.subr.bf16.mxu0 %v767
        %1226 = vmatpush1.bf16.msra.mxu0 %v766
        %1227 = vmatprep.subr.bf16.mxu0 %v783
        %1228 = vmatpush1.bf16.msra.mxu0 %v782
        %1229 = vmatprep.subr.bf16.mxu0 %v799
        %1230 = vmatpush1.bf16.msra.mxu0 %v798
        %1231 = vmatprep.subr.bf16.mxu0 0
        %1232 = vmatpush1.bf16.msra.mxu0 0
        %1233 = vmatprep.subr.bf16.mxu0 0
        %1234 = vmatpush1.bf16.msra.mxu0 0
        %1235 = vmatprep.subr.bf16.mxu0 0
        %1236 = vmatpush1.bf16.msra.mxu0 0
        %1237 = vmatprep.subr.bf16.mxu0 0
        %1238 = vmatpush1.bf16.msra.mxu0 0
        %1239 = vmatprep.subr.bf16.mxu0 0
        %1240 = vmatpush1.bf16.msra.mxu0 0
        %1241 = vmatprep.subr.bf16.mxu0 0
        %1242 = vmatpush1.bf16.msra.mxu0 0
        %1243 = vmatprep.subr.bf16.mxu0 0
        %1244 = vmatpush1.bf16.msra.mxu0 0
        %1245 = vmatprep.subr.bf16.mxu0 0
        %1246 = vmatpush1.bf16.msra.mxu0 0
        %1247 = vmatprep.mubr.bf16.mxu0 0
        %1248 = vmatmul.mubr.bf16.gmra.mrb[0].mxu0 %v159
        %v1249 = vpop.f32.mrb[0].mxu0
        %v1250 = vadd.f32 0.0, %v1249
        %v1251 = vpop.f32.mrb[0].mxu0
        %v1252 = vadd.f32 0.0, %v1251
        %v1253 = vpop.f32.mrb[0].mxu0
        %v1254 = vpop.f32.mrb[0].mxu0
        %1255 = vdwg.mxu0
        %s1256 = smul.u32 %s17, 2048
        %s1257 = sshra.s32 %s1256, 7
        %s1258 = sand.u32 %s1256, 127
        %s1259 = smul.addr %s1257, 8
        %s1260 = scalar_lea.vmem [#allocation7], %s1259
        %1261 = vst [vmem:[%s1260] sm:$0xff] %v963
        %1262 = vst [vmem:[%s1260 + $0x8] sm:$0xff] %v965
        %1263 = vst [vmem:[%s1260 + $0x10] sm:$0xff] %v1004
        %1264 = vst [vmem:[%s1260 + $0x18] sm:$0xff] %v1006
        %1265 = vst [vmem:[%s1260 + $0x20] sm:$0xff] %v1045
        %1266 = vst [vmem:[%s1260 + $0x28] sm:$0xff] %v1047
        %1267 = vst [vmem:[%s1260 + $0x30] sm:$0xff] %v1086
        %1268 = vst [vmem:[%s1260 + $0x38] sm:$0xff] %v1088
        %1269 = vst [vmem:[%s1260 + $0x40] sm:$0xff] %v1127
        %1270 = vst [vmem:[%s1260 + $0x48] sm:$0xff] %v1129
        %1271 = vst [vmem:[%s1260 + $0x50] sm:$0xff] %v1168
        %1272 = vst [vmem:[%s1260 + $0x58] sm:$0xff] %v1170
        %1273 = vst [vmem:[%s1260 + $0x60] sm:$0xff] %v1209
        %1274 = vst [vmem:[%s1260 + $0x68] sm:$0xff] %v1211
        %1275 = vst [vmem:[%s1260 + $0x70] sm:$0xff] %v1250
        %1276 = vst [vmem:[%s1260 + $0x78] sm:$0xff] %v1252
        %v1277 = vld [vmem:[#allocation2] sm:$0xff]
        %v1278 = vmax.f32 %v963, %v1045
        %v1279 = vmax.f32 %v965, %v1047
        %v1280 = vmax.f32 %v1004, %v1086
        %v1281 = vmax.f32 %v1006, %v1088
        %v1282 = vmax.f32 %v1278, %v1127
        %v1283 = vmax.f32 %v1279, %v1129
        %v1284 = vmax.f32 %v1280, %v1168
        %v1285 = vmax.f32 %v1281, %v1170
        %v1286 = vmax.f32 %v1282, %v1209
        %v1287 = vmax.f32 %v1283, %v1211
        %v1288 = vmax.f32 %v1284, %v1250
        %v1289 = vmax.f32 %v1285, %v1252
        %v1290 = vmax.f32 %v1286, %v1287
        %v1291 = vmax.f32 %v1288, %v1289
        %v1292 = vmax.f32 %v1290, %v1291
        %1293 = vmax.xlane.f32.xlu0 %v1292
        %v1294 = vpop.xlane.xlu0 %1293
        %v1295 = vmax.f32 %v1277, %v1294
        %v1296 = vld [vmem:[#allocation3] sm:$0xff]
        %v1297 = vsub.f32 %v1277, %v1295
        %v1298 = vmul.f32 %v1297, 1.442695
        %v1299 = vpow.pop %v1298
        %v1300 = vmul.f32 %v1296, %v1299
        %1302 = vset.pattern.permute.xlu0 0
        %1303 = vperm.xlu0 %1302, %v1295
        %v1304 = vpop.permute.xlu0 %1303
        %v1306 = vsub.f32 %v963, %v1304
        %v1307 = vsub.f32 %v965, %v1304
        %v1308 = vsub.f32 %v1004, %v1304
        %v1309 = vsub.f32 %v1006, %v1304
        %v1310 = vsub.f32 %v1045, %v1304
        %v1311 = vsub.f32 %v1047, %v1304
        %v1312 = vsub.f32 %v1086, %v1304
        %v1313 = vsub.f32 %v1088, %v1304
        %v1314 = vsub.f32 %v1127, %v1304
        %v1315 = vsub.f32 %v1129, %v1304
        %v1316 = vsub.f32 %v1168, %v1304
        %v1317 = vsub.f32 %v1170, %v1304
        %v1318 = vsub.f32 %v1209, %v1304
        %v1319 = vsub.f32 %v1211, %v1304
        %v1320 = vsub.f32 %v1250, %v1304
        %v1321 = vsub.f32 %v1252, %v1304
        %v1322 = vmul.f32 %v1306, 1.442695
        %v1323 = vpow.pop %v1322
        %v1324 = vmul.f32 %v1307, 1.442695
        %v1325 = vpow.pop %v1324
        %v1326 = vmul.f32 %v1308, 1.442695
        %v1327 = vpow.pop %v1326
        %v1328 = vmul.f32 %v1309, 1.442695
        %v1329 = vpow.pop %v1328
        %v1330 = vmul.f32 %v1310, 1.442695
        %v1331 = vpow.pop %v1330
        %v1332 = vmul.f32 %v1311, 1.442695
        %v1333 = vpow.pop %v1332
        %v1334 = vmul.f32 %v1312, 1.442695
        %v1335 = vpow.pop %v1334
        %v1336 = vmul.f32 %v1313, 1.442695
        %v1337 = vpow.pop %v1336
        %v1338 = vmul.f32 %v1314, 1.442695
        %v1339 = vpow.pop %v1338
        %v1340 = vmul.f32 %v1315, 1.442695
        %v1341 = vpow.pop %v1340
        %v1342 = vmul.f32 %v1316, 1.442695
        %v1343 = vpow.pop %v1342
        %v1344 = vmul.f32 %v1317, 1.442695
        %v1345 = vpow.pop %v1344
        %v1346 = vmul.f32 %v1318, 1.442695
        %v1347 = vpow.pop %v1346
        %v1348 = vmul.f32 %v1319, 1.442695
        %v1349 = vpow.pop %v1348
        %v1350 = vmul.f32 %v1320, 1.442695
        %v1351 = vpow.pop %v1350
        %v1352 = vmul.f32 %v1321, 1.442695
        %v1353 = vpow.pop %v1352
        %v1354 = vadd.f32 %v1323, %v1325
        %v1355 = vadd.f32 %v1354, %v1327
        %v1356 = vadd.f32 %v1355, %v1329
        %v1357 = vadd.f32 %v1356, %v1331
        %v1358 = vadd.f32 %v1357, %v1333
        %v1359 = vadd.f32 %v1358, %v1335
        %v1360 = vadd.f32 %v1359, %v1337
        %v1361 = vadd.f32 %v1360, %v1339
        %v1362 = vadd.f32 %v1361, %v1341
        %v1363 = vadd.f32 %v1362, %v1343
        %v1364 = vadd.f32 %v1363, %v1345
        %v1365 = vadd.f32 %v1364, %v1347
        %v1366 = vadd.f32 %v1365, %v1349
        %v1367 = vadd.f32 %v1366, %v1351
        %v1368 = vadd.f32 %v1367, %v1353
        %1369 = vadd.xlane.f32.xlu0 %v1368
        %v1370 = vpop.xlane.xlu0 %1369
        %v1371 = vadd.f32 %v1300, %v1370
        %vm1372 = vcmask 7168
        %1373 = vst.msk [vmem:[#allocation3] sm:$0xff] %vm1372, %v1371
        %1374 = vst.msk [vmem:[#allocation2] sm:$0xff] %vm1372, %v1295
        %p1375 = scmp.eq.s32.totalorder %s17, 1
        // Predicated region
        $region37: #{skipgram_forward.1} parent=27 // pred_check
          %p1376 = pneg %p1375
        $region38: #{skipgram_forward.1} parent=27 // pred_check_branch
          %1378 = sbr.rel (%p1376) target = $region40
        $region39: #{skipgram_forward.1} parent=27 // pred_region
          %v1379 = vld [vmem:[#allocation2] sm:$0xff]
          %v1380 = vld [vmem:[#allocation3] sm:$0xff]
          %v1381 = vlog2.pop %v1380
          %v1382 = vmul.f32 %v1381, 0.6931472
          %v1383 = vadd.f32 %v1379, %v1382
          %v1384 = vld [vmem:[#allocation7] sm:$0xff]
          %v1385 = vld [vmem:[#allocation7 + $0x8] sm:$0xff]
          %v1386 = vld [vmem:[#allocation7 + $0x10] sm:$0xff]
          %v1387 = vld [vmem:[#allocation7 + $0x18] sm:$0xff]
          %v1388 = vld [vmem:[#allocation7 + $0x20] sm:$0xff]
          %v1389 = vld [vmem:[#allocation7 + $0x28] sm:$0xff]
          %v1390 = vld [vmem:[#allocation7 + $0x30] sm:$0xff]
          %v1391 = vld [vmem:[#allocation7 + $0x38] sm:$0xff]
          %v1392 = vld [vmem:[#allocation7 + $0x40] sm:$0xff]
          %v1393 = vld [vmem:[#allocation7 + $0x48] sm:$0xff]
          %v1394 = vld [vmem:[#allocation7 + $0x50] sm:$0xff]
          %v1395 = vld [vmem:[#allocation7 + $0x58] sm:$0xff]
          %v1396 = vld [vmem:[#allocation7 + $0x60] sm:$0xff]
          %v1397 = vld [vmem:[#allocation7 + $0x68] sm:$0xff]
          %v1398 = vld [vmem:[#allocation7 + $0x70] sm:$0xff]
          %v1399 = vld [vmem:[#allocation7 + $0x78] sm:$0xff]
          %v1400 = vld [vmem:[#allocation7 + $0x80] sm:$0xff]
          %v1401 = vld [vmem:[#allocation7 + $0x88] sm:$0xff]
          %v1402 = vld [vmem:[#allocation7 + $0x90] sm:$0xff]
          %v1403 = vld [vmem:[#allocation7 + $0x98] sm:$0xff]
          %v1404 = vld [vmem:[#allocation7 + $0xa0] sm:$0xff]
          %v1405 = vld [vmem:[#allocation7 + $0xa8] sm:$0xff]
          %v1406 = vld [vmem:[#allocation7 + $0xb0] sm:$0xff]
          %v1407 = vld [vmem:[#allocation7 + $0xb8] sm:$0xff]
          %v1408 = vld [vmem:[#allocation7 + $0xc0] sm:$0xff]
          %v1409 = vld [vmem:[#allocation7 + $0xc8] sm:$0xff]
          %v1410 = vld [vmem:[#allocation7 + $0xd0] sm:$0xff]
          %v1411 = vld [vmem:[#allocation7 + $0xd8] sm:$0xff]
          %v1412 = vld [vmem:[#allocation7 + $0xe0] sm:$0xff]
          %v1413 = vld [vmem:[#allocation7 + $0xe8] sm:$0xff]
          %v1414 = vld [vmem:[#allocation7 + $0xf0] sm:$0xff]
          %v1415 = vld [vmem:[#allocation7 + $0xf8] sm:$0xff]
          %1417 = vset.pattern.permute.xlu0 0
          %1418 = vperm.xlu0 %1417, %v1383
          %v1419 = vpop.permute.xlu0 %1418
          %v1421 = vsub.f32 %v1384, %v1419
          %v1422 = vsub.f32 %v1385, %v1419
          %v1423 = vsub.f32 %v1386, %v1419
          %v1424 = vsub.f32 %v1387, %v1419
          %v1425 = vsub.f32 %v1388, %v1419
          %v1426 = vsub.f32 %v1389, %v1419
          %v1427 = vsub.f32 %v1390, %v1419
          %v1428 = vsub.f32 %v1391, %v1419
          %v1429 = vsub.f32 %v1392, %v1419
          %v1430 = vsub.f32 %v1393, %v1419
          %v1431 = vsub.f32 %v1394, %v1419
          %v1432 = vsub.f32 %v1395, %v1419
          %v1433 = vsub.f32 %v1396, %v1419
          %v1434 = vsub.f32 %v1397, %v1419
          %v1435 = vsub.f32 %v1398, %v1419
          %v1436 = vsub.f32 %v1399, %v1419
          %v1437 = vsub.f32 %v1400, %v1419
          %v1438 = vsub.f32 %v1401, %v1419
          %v1439 = vsub.f32 %v1402, %v1419
          %v1440 = vsub.f32 %v1403, %v1419
          %v1441 = vsub.f32 %v1404, %v1419
          %v1442 = vsub.f32 %v1405, %v1419
          %v1443 = vsub.f32 %v1406, %v1419
          %v1444 = vsub.f32 %v1407, %v1419
          %v1445 = vsub.f32 %v1408, %v1419
          %v1446 = vsub.f32 %v1409, %v1419
          %v1447 = vsub.f32 %v1410, %v1419
          %v1448 = vsub.f32 %v1411, %v1419
          %v1449 = vsub.f32 %v1412, %v1419
          %v1450 = vsub.f32 %v1413, %v1419
          %v1451 = vsub.f32 %v1414, %v1419
          %v1452 = vsub.f32 %v1415, %v1419
          %1453 = vst [vmem:[#allocation7] sm:$0xff] %v1421
          %1454 = vst [vmem:[#allocation7 + $0x8] sm:$0xff] %v1422
          %1455 = vst [vmem:[#allocation7 + $0x10] sm:$0xff] %v1423
          %1456 = vst [vmem:[#allocation7 + $0x18] sm:$0xff] %v1424
          %1457 = vst [vmem:[#allocation7 + $0x20] sm:$0xff] %v1425
          %1458 = vst [vmem:[#allocation7 + $0x28] sm:$0xff] %v1426
          %1459 = vst [vmem:[#allocation7 + $0x30] sm:$0xff] %v1427
          %1460 = vst [vmem:[#allocation7 + $0x38] sm:$0xff] %v1428
          %1461 = vst [vmem:[#allocation7 + $0x40] sm:$0xff] %v1429
          %1462 = vst [vmem:[#allocation7 + $0x48] sm:$0xff] %v1430
          %1463 = vst [vmem:[#allocation7 + $0x50] sm:$0xff] %v1431
          %1464 = vst [vmem:[#allocation7 + $0x58] sm:$0xff] %v1432
          %1465 = vst [vmem:[#allocation7 + $0x60] sm:$0xff] %v1433
          %1466 = vst [vmem:[#allocation7 + $0x68] sm:$0xff] %v1434
          %1467 = vst [vmem:[#allocation7 + $0x70] sm:$0xff] %v1435
          %1468 = vst [vmem:[#allocation7 + $0x78] sm:$0xff] %v1436
          %1469 = vst [vmem:[#allocation7 + $0x80] sm:$0xff] %v1437
          %1470 = vst [vmem:[#allocation7 + $0x88] sm:$0xff] %v1438
          %1471 = vst [vmem:[#allocation7 + $0x90] sm:$0xff] %v1439
          %1472 = vst [vmem:[#allocation7 + $0x98] sm:$0xff] %v1440
          %1473 = vst [vmem:[#allocation7 + $0xa0] sm:$0xff] %v1441
          %1474 = vst [vmem:[#allocation7 + $0xa8] sm:$0xff] %v1442
          %1475 = vst [vmem:[#allocation7 + $0xb0] sm:$0xff] %v1443
          %1476 = vst [vmem:[#allocation7 + $0xb8] sm:$0xff] %v1444
          %1477 = vst [vmem:[#allocation7 + $0xc0] sm:$0xff] %v1445
          %1478 = vst [vmem:[#allocation7 + $0xc8] sm:$0xff] %v1446
          %1479 = vst [vmem:[#allocation7 + $0xd0] sm:$0xff] %v1447
          %1480 = vst [vmem:[#allocation7 + $0xd8] sm:$0xff] %v1448
          %1481 = vst [vmem:[#allocation7 + $0xe0] sm:$0xff] %v1449
          %1482 = vst [vmem:[#allocation7 + $0xe8] sm:$0xff] %v1450
          %1483 = vst [vmem:[#allocation7 + $0xf0] sm:$0xff] %v1451
          %1484 = vst [vmem:[#allocation7 + $0xf8] sm:$0xff] %v1452
        $region40: #{skipgram_forward.1} parent=27 // pred_fallthru
          _
        // Predicated region
        $region41: #{skipgram_forward.1} parent=27 // pred_check
          %p1485 = pneg %p77
        $region42: #{skipgram_forward.1} parent=27 // pred_check_branch
          %1487 = sbr.rel (%p1485) target = $region44
        $region43: #{skipgram_forward.1} parent=27 // pred_region
          %s1489 = ssub.s32 4096, 4096
          %1490 = vsyncadd [#allocation6], %s1489
          %s1492 = sshll.u32 [#allocation7], 4
          %s1493 = int_to_ptr.vmem [resolvable:$true] %s1492
          %1495 = dma.vmem_to_hbm [thread:$0]  %s1493, 4096, %s2, [#allocation6]
        $region44: #{skipgram_forward.1} parent=27 // pred_fallthru
          _
        // Predicated region
        $region45: #{skipgram_forward.1} parent=27 // pred_check
          %p1496 = pneg %p77
        $region46: #{skipgram_forward.1} parent=27 // pred_check_branch
          %1498 = sbr.rel (%p1496) target = $region48
        $region47: #{skipgram_forward.1} parent=27 // pred_region
          %1499 = dma.done [#allocation6], 4096
        $region48: #{skipgram_forward.1} parent=27 // pred_fallthru
          _
      $region28: #{skipgram_forward.1} parent=5 // pred_fallthru
        _
      %p1500 = scmp.le.s32.totalorder 2, %s12
      // Predicated region
      $region49: #{skipgram_forward.1} parent=5 // pred_check
        %p1501 = pneg %p1500
      $region50: #{skipgram_forward.1} parent=5 // pred_check_branch
        %1503 = sbr.rel (%p1501) target = $region52
      $region51: #{skipgram_forward.1} parent=5 // pred_region
        %s1504 = ssub.s32 %s12, 2
      $region52: #{skipgram_forward.1} parent=5 // pred_fallthru
        _
    $region6: #{skipgram_forward.1} parent=1 // loop_footer
      %s16 = sadd.s32 1, %s12
    $region7: #{skipgram_forward.1} parent=1 // loop_footer_branch
      %11 = sbr.rel target = $region3
    $region8: #{skipgram_forward.1} parent=1 // loop_exit
      _
    %1505 = vsyncpa [#allocation5], 1
    %s1506 = scalar_lea.sflag [#allocation5], 1
    %1507 = vsyncpa %s1506, 1
    %1508 = vsyncpa [#allocation6], 1
    %s1509 = scalar_lea.sflag [#allocation6], 1
    %1510 = vsyncpa %s1509, 1

</llo_original>
